<compile_context>
chip_gen: v6e
topology: v6e:2x2x1
jax: 0.10.0
libtpu: 0.0.40
codegen_flags: <defaults>
</compile_context>

<pallas_src>
import functools

import jax
import jax.numpy as jnp
from jax.experimental import pallas as pl
from jax.experimental.pallas import tpu as pltpu


_VMEM_BUDGET = 40 * 1024 * 1024   # working-set cap used by the tile chooser
_VMEM_LIMIT = 48 * 1024 * 1024    # explicit scoped-VMEM limit (fits v5e/v6e/v7x)


# -----------------------------------------------------------------------------
# Fused matmul kernels:  Y = act( X @ W_scaled + bias )
# -----------------------------------------------------------------------------
def _fused_matmul_kernel_single(x_ref, w_ref, b_ref, o_ref, *, act):
    """Single reduction step: no accumulator scratch needed."""
    y = jnp.dot(x_ref[...], w_ref[...], preferred_element_type=jnp.float32)
    y = y + b_ref[...]
    if act:                                   # LeakyReLU(0.1)
        y = jnp.where(y >= 0, y, 0.1 * y)
    o_ref[...] = y.astype(o_ref.dtype)


def _fused_matmul_kernel_multi(x_ref, w_ref, b_ref, o_ref, acc_ref, *, act):
    """K split over grid axis 2; f32 VMEM scratch accumulator, bf16 writeback."""
    k = pl.program_id(2)

    @pl.when(k == 0)
    def _():
        acc_ref[...] = jnp.zeros_like(acc_ref)

    acc_ref[...] += jnp.dot(x_ref[...], w_ref[...],
                            preferred_element_type=jnp.float32)

    @pl.when(k == pl.num_programs(2) - 1)
    def _():
        y = acc_ref[...] + b_ref[...]
        if act:                               # LeakyReLU(0.1)
            y = jnp.where(y >= 0, y, 0.1 * y)
        o_ref[...] = y.astype(o_ref.dtype)


def _largest_tile(n, cap, unit):
    """Largest multiple of `unit` dividing n and <= cap; falls back to full n."""
    if n <= cap:
        return n
    t = (cap // unit) * unit
    while t >= unit:
        if n % t == 0:
            return t
        t -= unit
    return n


def _choose_tiles(M, K, Cout):
    """Tile policy for DMA/overhead-bound layers (tiny M, modest K/Cout):
       - single reduction step (tk = K) unless VMEM budget forces a split
       - >= 2 parallel output tiles whenever the layer can be split (megacore)"""
    tn = _largest_tile(Cout, 512, 128)
    tm = _largest_tile(M, 256, 8)
    if (M // tm) * (Cout // tn) < 2:           # both axes single-tile -> try to split
        if Cout >= 256:
            tn = _largest_tile(Cout, Cout // 2, 128)
        elif M >= 16:
            tm = _largest_tile(M, max(M // 2, 8), 8)

    def vmem_bytes(tk_):
        # double-buffered bf16 blocks + f32 acc scratch + bias blocks
        return (2 * (tm * tk_ + tk_ * tn + tm * tn) * 2
                + tm * tn * 4 + 2 * tn * 4)

    tk = K
    if vmem_bytes(tk) > _VMEM_BUDGET:
        cands = sorted((d for d in range(128, K, 128) if K % d == 0), reverse=True)
        for c in cands:
            if vmem_bytes(c) <= _VMEM_BUDGET:
                tk = c
                break
        else:
            if cands:
                tk = cands[-1]
    return tm, tn, tk


def fused_matmul(x2d, w2d, bias, act):
    """x2d: (M, K) bf16, w2d: (K, Cout) bf16 (BN scale pre-folded), bias: (Cout,) f32.
    Returns (M, Cout) bf16 = act(x @ w + bias). Cout must be a multiple of 128."""
    M, K = x2d.shape
    Cout = w2d.shape[1]
    tm, tn, tk = _choose_tiles(M, K, Cout)
    gi, gj, gk = M // tm, Cout // tn, K // tk

    bias2d = bias.reshape(1, Cout).astype(jnp.float32)

    # Activations are re-streamed only in the (unused here) multi-k layout;
    # weights are re-streamed once per M tile; output/bias are written/read once.
    x_bytes = (gj if gk > 1 else 1) * M * K * 2
    cost = pl.CostEstimate(
        flops=int(2 * M * K * Cout),
        transcendentals=0,
        bytes_accessed=int(x_bytes + gi * K * Cout * 2 + M * Cout * 2 + gi * Cout * 4),
    )
    cparams = pltpu.CompilerParams(
        dimension_semantics=(("parallel", "parallel") if gk == 1
                             else ("parallel", "parallel", "arbitrary")),
        vmem_limit_bytes=_VMEM_LIMIT,
    )

    if gk == 1:
        kernel = functools.partial(_fused_matmul_kernel_single, act=act)
        grid_spec = pltpu.PrefetchScalarGridSpec(
            num_scalar_prefetch=0,
            grid=(gi, gj),
            in_specs=[
                pl.BlockSpec((tm, tk), lambda i, j: (i, 0)),
                pl.BlockSpec((tk, tn), lambda i, j: (0, j)),
                pl.BlockSpec((1, tn), lambda i, j: (0, j)),
            ],
            out_specs=pl.BlockSpec((tm, tn), lambda i, j: (i, j)),
        )
    else:
        kernel = functools.partial(_fused_matmul_kernel_multi, act=act)
        grid_spec = pltpu.PrefetchScalarGridSpec(
            num_scalar_prefetch=0,
            grid=(gi, gj, gk),
            in_specs=[
                pl.BlockSpec((tm, tk), lambda i, j, k: (i, k)),
                pl.BlockSpec((tk, tn), lambda i, j, k: (k, j)),
                pl.BlockSpec((1, tn), lambda i, j, k: (0, j)),
            ],
            out_specs=pl.BlockSpec((tm, tn), lambda i, j, k: (i, j)),
            scratch_shapes=[pltpu.VMEM((tm, tn), jnp.float32)],
        )

    return pl.pallas_call(
        kernel,
        out_shape=jax.ShapeDtypeStruct((M, Cout), jnp.bfloat16),
        grid_spec=grid_spec,
        compiler_params=cparams,
        cost_estimate=cost,
    )(x2d, w2d, bias2d)


# -----------------------------------------------------------------------------
# SPP kernel: maxpools 13/9/5 (stride 1, -inf padding) + identity, channel concat
# -----------------------------------------------------------------------------
def _spp_kernel(xp_ref, o_ref, *, H, W, pmax, pool_sizes):
    xp = xp_ref[...]

    # Row-axis (H) separable maxes, built incrementally outward from the center tap
    # (the 5-window is a prefix of the 9-window which is a prefix of the 13-window).
    rowmax = {}
    cur = xp[:, pmax:pmax + H, :, :]
    r = 0
    for p in sorted(pool_sizes):
        q = p // 2
        while r < q:
            r += 1
            cur = jnp.maximum(cur, xp[:, pmax - r:pmax - r + H, :, :])
            cur = jnp.maximum(cur, xp[:, pmax + r:pmax + r + H, :, :])
        rowmax[p] = cur

    # Column-axis (W) maxes per pool size; concat in reversed module order + identity.
    feats = []
    for p in pool_sizes[::-1]:
        q = p // 2
        rm = rowmax[p]
        out = rm[:, :, pmax - q:pmax - q + W, :]
        for dx in range(1, p):
            out = jnp.maximum(out, rm[:, :, pmax - q + dx:pmax - q + dx + W, :])
        feats.append(out)
    feats.append(xp[:, pmax:pmax + H, pmax:pmax + W, :])
    o_ref[...] = jnp.concatenate(feats, axis=-1)


def spp(x, pool_sizes=(5, 9, 13)):
    """x: (N, H, W, C) NHWC bf16. Returns (N, H, W, C*(len(pool_sizes)+1)) bf16."""
    N, H, W, C = x.shape
    pmax = max(pool_sizes) // 2
    xp = jnp.pad(x, ((0, 0), (pmax, pmax), (pmax, pmax), (0, 0)),
                 constant_values=-jnp.inf)   # maxpool pads with -inf (PyTorch semantics)
    kernel = functools.partial(_spp_kernel, H=H, W=W, pmax=pmax,
                               pool_sizes=tuple(pool_sizes))
    return pl.pallas_call(
        kernel,
        out_shape=jax.ShapeDtypeStruct((N, H, W, C * (len(pool_sizes) + 1)), x.dtype),
    )(xp)


# -----------------------------------------------------------------------------
# Conv layer glue (im2col in bf16) + application helpers
# -----------------------------------------------------------------------------
def _round_up(n, m):
    return ((n + m - 1) // m) * m


def _im2col(x, k, stride):
    N, H, W, C = x.shape
    pad = (k - 1) // 2
    Ho = (H + 2 * pad - k) // stride + 1
    Wo = (W + 2 * pad - k) // stride + 1
    xp = jnp.pad(x, ((0, 0), (pad, pad), (pad, pad), (0, 0)))
    cols = []
    for dy in range(k):
        for dx in range(k):
            cols.append(xp[:, dy: dy + (Ho - 1) * stride + 1: stride,
                           dx: dx + (Wo - 1) * stride + 1: stride, :])
    return jnp.concatenate(cols, axis=-1), Ho, Wo


def conv_apply(x, p):
    """x: NHWC bf16. Returns NHWC bf16."""
    w = p['w']                       # (k, k, Cin, Cout) f32
    k, _, cin, cout = w.shape
    stride = p['stride']

    if k == 1 and stride == 1:
        patches, Ho, Wo = x, x.shape[1], x.shape[2]
    else:
        patches, Ho, Wo = _im2col(x, k, stride)

    N = x.shape[0]
    M = N * Ho * Wo
    K = k * k * cin

    # Fold the eval-mode BN scale into the weights in f32, then cast to bf16.
    w2d = w.reshape(K, cout) * p['scale'][None, :]
    bias = p['bias']
    cout_pad = _round_up(cout, 128)          # lane-dense output (head convs: 21 -> 128)
    if cout_pad != cout:
        w2d = jnp.pad(w2d, ((0, 0), (0, cout_pad - cout)))
        bias = jnp.pad(bias, (0, cout_pad - cout))

    y = fused_matmul(patches.reshape(M, K), w2d.astype(jnp.bfloat16), bias, p['act'])
    if cout_pad != cout:
        y = y[:, :cout]
    return y.reshape(N, Ho, Wo, cout)


def seq_apply(layers, x):
    for p in layers:
        x = conv_apply(x, p)
    return x


def upsample_apply(p, x):
    """Upsample module: 1x1 conv_bn_leaky followed by nearest 2x upsample (bf16)."""
    y = conv_apply(x, p)
    y = jnp.repeat(jnp.repeat(y, 2, axis=1), 2, axis=2)
    return y


# -----------------------------------------------------------------------------
# Deterministic parameter init (BN folded to per-channel scale/bias, eval mode)
# -----------------------------------------------------------------------------
class _KeyGen:
    def __init__(self, key):
        self.key = key
        self.i = 0

    def __call__(self):
        self.i += 1
        return jax.random.fold_in(self.key, self.i)


def _cbl(kg, cin, cout, ksize, stride=1):
    """conv2d() in the reference: Conv(no bias) + BN + LeakyReLU(0.1)."""
    std = 1.0 / jnp.sqrt(float(ksize * ksize * cin))
    w = jax.random.normal(kg(), (ksize, ksize, cin, cout), jnp.float32) * std
    gamma = 1.0 + 0.1 * jax.random.normal(kg(), (cout,), jnp.float32)
    beta = 0.1 * jax.random.normal(kg(), (cout,), jnp.float32)
    eps = 1e-5
    # running_mean = 0, running_var = 1 (fresh BN, eval semantics)
    scale = gamma / jnp.sqrt(1.0 + eps)
    bias = beta
    return {'w': w, 'scale': scale, 'bias': bias, 'stride': stride, 'act': True}


def _plain_conv(kg, cin, cout, ksize=1):
    """Final head conv: Conv2d with bias, no BN, no activation."""
    std = 1.0 / jnp.sqrt(float(ksize * ksize * cin))
    w = jax.random.normal(kg(), (ksize, ksize, cin, cout), jnp.float32) * std
    bias = 0.1 * jax.random.normal(kg(), (cout,), jnp.float32)
    return {'w': w, 'scale': jnp.ones((cout,), jnp.float32), 'bias': bias,
            'stride': 1, 'act': False}


def _three_conv(kg, fl, cin):
    return [_cbl(kg, cin, fl[0], 1), _cbl(kg, fl[0], fl[1], 3), _cbl(kg, fl[1], fl[0], 1)]


def _five_conv(kg, fl, cin):
    return [_cbl(kg, cin, fl[0], 1), _cbl(kg, fl[0], fl[1], 3), _cbl(kg, fl[1], fl[0], 1),
            _cbl(kg, fl[0], fl[1], 3), _cbl(kg, fl[1], fl[0], 1)]


def _yolo_head(kg, fl, cin):
    return [_cbl(kg, cin, fl[0], 3), _plain_conv(kg, fl[0], fl[1], 1)]


def init_yolo_body(key, anchors_mask, num_classes):
    kg = _KeyGen(key)
    p = {}
    p['conv1'] = _three_conv(kg, [512, 1024], 1024)
    p['conv2'] = _three_conv(kg, [512, 1024], 2048)
    p['upsample1'] = _cbl(kg, 512, 256, 1)
    p['conv_for_P4'] = _cbl(kg, 512, 256, 1)
    p['five1'] = _five_conv(kg, [256, 512], 512)
    p['upsample2'] = _cbl(kg, 256, 128, 1)
    p['conv_for_P3'] = _cbl(kg, 256, 128, 1)
    p['five2'] = _five_conv(kg, [128, 256], 256)
    p['head3'] = _yolo_head(kg, [256, len(anchors_mask[0]) * (5 + num_classes)], 128)
    p['down1'] = _cbl(kg, 128, 256, 3, stride=2)
    p['five3'] = _five_conv(kg, [256, 512], 512)
    p['head2'] = _yolo_head(kg, [512, len(anchors_mask[1]) * (5 + num_classes)], 256)
    p['down2'] = _cbl(kg, 256, 512, 3, stride=2)
    p['five4'] = _five_conv(kg, [512, 1024], 1024)
    p['head1'] = _yolo_head(kg, [1024, len(anchors_mask[2]) * (5 + num_classes)], 512)
    return p


# -----------------------------------------------------------------------------
# YoloBody forward (neck + heads); out3/out4/out5 are NCHW backbone feature maps
# -----------------------------------------------------------------------------
def yolo_body_forward(params, out3_nchw, out4_nchw, out5_nchw):
    to_nhwc = lambda t: jnp.transpose(t, (0, 2, 3, 1)).astype(jnp.bfloat16)
    to_nchw = lambda t: jnp.transpose(t, (0, 3, 1, 2)).astype(jnp.float32)
    out3, out4, out5 = to_nhwc(out3_nchw), to_nhwc(out4_nchw), to_nhwc(out5_nchw)

    P5 = seq_apply(params['conv1'], out5)
    P5 = spp(P5)
    P5 = seq_apply(params['conv2'], P5)
    P5_upsample = upsample_apply(params['upsample1'], P5)

    P4 = conv_apply(out4, params['conv_for_P4'])
    P4 = jnp.concatenate([P4, P5_upsample], axis=-1)
    P4 = seq_apply(params['five1'], P4)
    P4_upsample = upsample_apply(params['upsample2'], P4)

    P3 = conv_apply(out3, params['conv_for_P3'])
    P3 = jnp.concatenate([P3, P4_upsample], axis=-1)
    P3_out = seq_apply(params['five2'], P3)

    P3_downsample = conv_apply(P3_out, params['down1'])
    P4 = jnp.concatenate([P3_downsample, P4], axis=-1)
    P4_out = seq_apply(params['five3'], P4)

    P4_downsample = conv_apply(P4_out, params['down2'])
    P5 = jnp.concatenate([P4_downsample, P5], axis=-1)
    P5_out = seq_apply(params['five4'], P5)

    out2 = seq_apply(params['head3'], P3_out)   # stride-8 head
    out1 = seq_apply(params['head2'], P4_out)   # stride-16 head
    out0 = seq_apply(params['head1'], P5_out)   # stride-32 head
    return to_nchw(out0), to_nchw(out1), to_nchw(out2)


# -----------------------------------------------------------------------------
# Main
# -----------------------------------------------------------------------------
if __name__ == "__main__":
    anchors_mask = [[6, 7, 8], [3, 4, 5], [0, 1, 2]]
    num_classes = 2
    head_c = 3 * (5 + num_classes)   # 21

    key = jax.random.PRNGKey(0)
    k_params, k3, k4, k5 = jax.random.split(key, 4)

    params = init_yolo_body(k_params, anchors_mask, num_classes)

    # Backbone feature maps (as darknet53 would produce for a 128x128 input), NCHW.
    B = 2
    out3 = jax.random.normal(k3, (B, 256, 16, 16), jnp.float32) * 0.1
    out4 = jax.random.normal(k4, (B, 512, 8, 8), jnp.float32) * 0.1
    out5 = jax.random.normal(k5, (B, 1024, 4, 4), jnp.float32) * 0.1

    o0, o1, o2 = yolo_body_forward(params, out3, out4, out5)
    jax.block_until_ready((o0, o1, o2))

    assert o0.shape == (B, head_c, 4, 4), o0.shape
    assert o1.shape == (B, head_c, 8, 8), o1.shape
    assert o2.shape == (B, head_c, 16, 16), o2.shape
    assert jnp.all(jnp.isfinite(o0)) and jnp.all(jnp.isfinite(o1)) and jnp.all(jnp.isfinite(o2))

    print("KERNEL_OK")
</pallas_src>

<mosaic_0001>
module attributes {stable_mosaic.version = 11 : i64} {
  func.func @_fused_matmul_kernel_single(%arg0: i32, %arg1: i32, %arg2: memref<32x1024xbf16, #tpu.memory_space<vmem>>, %arg3: memref<1024x256xbf16, #tpu.memory_space<vmem>>, %arg4: memref<1x256xf32, #tpu.memory_space<vmem>>, %arg5: memref<32x256xbf16, #tpu.memory_space<vmem>>) attributes {dimension_semantics = [#tpu.dimension_semantics<parallel>, #tpu.dimension_semantics<parallel>], iteration_bounds = array<i64: 1, 2>, scalar_prefetch = 0 : i64, scratch_operands = 0 : i64, tpu.core_type = #tpu.core_type<tc>, window_params = [{transform_indices = @transform_0, window_bounds = array<i64: 32, 1024>}, {transform_indices = @transform_1, window_bounds = array<i64: 1024, 256>}, {transform_indices = @transform_2, window_bounds = array<i64: 1, 256>}, {transform_indices = @transform_3, window_bounds = array<i64: 32, 256>}]} {
    %c0 = arith.constant 0 : index
    %c0_0 = arith.constant 0 : index
    %0 = vector.load %arg2[%c0, %c0_0] : memref<32x1024xbf16, #tpu.memory_space<vmem>>, vector<32x1024xbf16>
    %c0_1 = arith.constant 0 : index
    %c0_2 = arith.constant 0 : index
    %1 = vector.load %arg3[%c0_1, %c0_2] : memref<1024x256xbf16, #tpu.memory_space<vmem>>, vector<1024x256xbf16>
    %cst = arith.constant dense<0.000000e+00> : vector<32x256xf32>
    %2 = tpu.matmul %0, %1, %cst {dimension_numbers = #tpu.dot_dimension_numbers<[1], [0], [0], [1], [0, 0, 1, 1], [], []>} : vector<32x1024xbf16>, vector<1024x256xbf16>, vector<32x256xf32> -> vector<32x256xf32>
    %c0_3 = arith.constant 0 : index
    %c0_4 = arith.constant 0 : index
    %3 = vector.load %arg4[%c0_3, %c0_4] : memref<1x256xf32, #tpu.memory_space<vmem>>, vector<1x256xf32>
    %4 = vector.broadcast %3 : vector<1x256xf32> to vector<32x256xf32>
    %5 = arith.addf %2, %4 : vector<32x256xf32>
    %cst_5 = arith.constant 0.000000e+00 : f32
    %6 = vector.broadcast %cst_5 : f32 to vector<32x256xf32>
    %7 = arith.cmpf oge, %5, %6 : vector<32x256xf32>
    %cst_6 = arith.constant 1.000000e-01 : f32
    %8 = vector.broadcast %cst_6 : f32 to vector<32x256xf32>
    %9 = arith.mulf %8, %5 : vector<32x256xf32>
    %10 = arith.select %7, %5, %9 : vector<32x256xi1>, vector<32x256xf32>
    %11 = arith.truncf %10 : vector<32x256xf32> to vector<32x256xbf16>
    %c0_7 = arith.constant 0 : index
    %c0_8 = arith.constant 0 : index
    %12 = vector.load %arg5[%c0_7, %c0_8] : memref<32x256xbf16, #tpu.memory_space<vmem>>, vector<32x256xbf16>
    tpu.vector_store %arg5[%c0_7, %c0_8], %11 {strides = array<i32>} : memref<32x256xbf16, #tpu.memory_space<vmem>>, vector<32x256xbf16>,
    return
  }
  func.func @transform_0(%arg0: i32, %arg1: i32) -> (i32, i32) {
    %c0_i32 = arith.constant 0 : i32
    %c0_i32_0 = arith.constant 0 : i32
    return %arg0, %c0_i32 : i32, i32
  }
  func.func @transform_1(%arg0: i32, %arg1: i32) -> (i32, i32) {
    %c0_i32 = arith.constant 0 : i32
    %c0_i32_0 = arith.constant 0 : i32
    return %c0_i32, %arg1 : i32, i32
  }
  func.func @transform_2(%arg0: i32, %arg1: i32) -> (i32, i32) {
    %c0_i32 = arith.constant 0 : i32
    %c0_i32_0 = arith.constant 0 : i32
    return %c0_i32, %arg1 : i32, i32
  }
  func.func @transform_3(%arg0: i32, %arg1: i32) -> (i32, i32) {
    %c0_i32 = arith.constant 0 : i32
    return %arg0, %arg1 : i32, i32
  }
}

</mosaic_0001>

<llo_original>
// kernel: tpu_custom_call.1
$region0: #{tpu_custom_call.1}
  #allocation0 [shape = 'u32[]', space=smem, size = 0x4, offset = 0x4, fixed_abs, tag = 'smem constant byte address 0x4 - core index']
  #allocation1 [shape = 'u32[144,128]{1,0:T(1,128)}', space=vmem, size = 0x12000, scoped, tag = 'internal scratch']
  %s0 = inlined_call_operand.hbm [shape: bf16[32,1024], index: 0, kind: input, shape index: {}]
  %s1 = inlined_call_operand.hbm [shape: bf16[1024,512], index: 1, kind: input, shape index: {}]
  %s2 = inlined_call_operand.hbm [shape: f32[1,512], index: 2, kind: input, shape index: {}]
  %s3 = inlined_call_operand.hbm [shape: bf16[32,512], index: 3, kind: output, shape index: {}]
  %s4 = sld [smem:[#allocation0]]
  $region57: #{tpu_custom_call.1} parent=0
    _
  %s6 = ssub.s32 1, %s4
  %s7 = scalar_select 0, %s6, %s4
  $region1: #{tpu_custom_call.1} parent=0
    #allocation2 [shape = 'u8[65536]{0}', space=vmem, size = 0x10000, scoped, tag = 'input window, operand 0, single buffered']
    #allocation3 [shape = 's32[2]{0}', space=sflag, size = 0x8, scoped, tag = 'scoped memory for tpu_custom_call.1']
    #allocation4 [shape = 's32[2]{0}', space=sflag, size = 0x8, scoped, tag = 'scoped memory for tpu_custom_call.1']
    #allocation5 [shape = 'u8[1048576]{0}', space=vmem, size = 0x100000, scoped, tag = 'input window, operand 1']
    #allocation6 [shape = 's32[2]{0}', space=sflag, size = 0x8, scoped, tag = 'scoped memory for tpu_custom_call.1']
    #allocation7 [shape = 'u8[2048]{0}', space=vmem, size = 0x800, scoped, tag = 'input window, operand 2']
    #allocation8 [shape = 'u8[32768]{0}', space=vmem, size = 0x8000, scoped, tag = 'output window, operand 0']
    %8 = vsyncpa [#allocation3], 0
    %9 = vsyncpa [#allocation6], 0
    %s10 = scalar_lea.sflag [#allocation6], 1
    %11 = vsyncpa %s10, 0
    %12 = vsyncpa [#allocation4], 0
    %s13 = scalar_lea.sflag [#allocation4], 1
    %14 = vsyncpa %s13, 0
    loop: start=0, step=1, limit=4
    $region2: #{tpu_custom_call.1} parent=1 // loop_pre_header
      _
    $region3: #{tpu_custom_call.1} parent=1 // loop_header
      %s16 = sphi 0, %s20
      %p17 = scmp.ge.s32.totalorder %s16, 4
      %s23 = sphi 0, %s35
      %s24 = sphi 0, %s31
      %s25 = sphi 0, %s23
      %s26 = sphi 0, %s24
      %s27 = sphi 0, %s25
      %s28 = sphi 0, %s26
      %s38 = sphi 0, %s40
      %s41 = sphi 0, %s38
      %s42 = sphi 0, %s41
      %s58 = sphi 0, %s42
      %s64 = sphi 0, %s66
      %s67 = sphi 0, %s64
      %s68 = sphi 0, %s67
      %s84 = sphi 0, %s68
      %s90 = sphi 0, %s92
      %s93 = sphi 0, %s90
      %s94 = sphi 0, %s93
      %s110 = sphi 0, %s94
      %s118 = sphi 0, %s120
      %s121 = sphi 0, %s118
      %s122 = sphi 0, %s121
      %s138 = sphi 0, %s122
    $region4: #{tpu_custom_call.1} parent=1 // loop_header_branch
      %19 = sbr.rel (%p17) target = $region8
    $region5: #{tpu_custom_call.1} parent=1 // loop_body
      %s21 = ssub.s32 %s16, 1
      %s22 = ssub.s32 %s16, 2
      %s29 = sadd.s32 1, %s24
      %p30 = scmp.ge.s32.totalorder %s29, 2
      %s31 = scalar_select %p30, 0, %s29
      %s32 = sadd.s32 1, %s23
      %s33 = scalar_select %p30, %s32, %s23
      %p34 = scmp.ge.s32.totalorder %s33, 1
      %s35 = scalar_select %p34, 0, %s33
      %s36 = ssub.s32 %s23, %s35
      %p37 = scmp.eq.s32.totalorder %s36, 0
      %s39 = sadd.s32 %s38, 1
      %s40 = scalar_select %p37, %s38, %s39
      %p43 = pneg %p37
      %p44 = scmp.eq.s32.totalorder %s16, 1
      %p45 = por %p43, %p44
      %p46 = scmp.ne.s32.totalorder %s38, %s41
      %p47 = scmp.eq.s32.totalorder %s16, 0
      %p48 = por %p46, %p47
      %p49 = scmp.ne.s32.totalorder %s38, %s41
      %p50 = scmp.eq.s32.totalorder %s21, 1
      %p51 = por %p49, %p50
      %p52 = scmp.ne.s32.totalorder %s41, %s42
      %p53 = scmp.eq.s32.totalorder %s21, 0
      %p54 = por %p52, %p53
      %p55 = scmp.ne.s32.totalorder %s41, %s42
      %p56 = scmp.eq.s32.totalorder %s22, 1
      %p57 = por %p55, %p56
      %p59 = scmp.ne.s32.totalorder %s42, %s58
      %p60 = scmp.eq.s32.totalorder %s22, 0
      %p61 = por %p59, %p60
      %s62 = ssub.s32 %s24, %s31
      %p63 = scmp.eq.s32.totalorder %s62, 0
      %s65 = sadd.s32 %s64, 1
      %s66 = scalar_select %p63, %s64, %s65
      %p69 = pneg %p63
      %p70 = scmp.eq.s32.totalorder %s16, 1
      %p71 = por %p69, %p70
      %p72 = scmp.ne.s32.totalorder %s64, %s67
      %p73 = scmp.eq.s32.totalorder %s16, 0
      %p74 = por %p72, %p73
      %p75 = scmp.ne.s32.totalorder %s64, %s67
      %p76 = scmp.eq.s32.totalorder %s21, 1
      %p77 = por %p75, %p76
      %p78 = scmp.ne.s32.totalorder %s67, %s68
      %p79 = scmp.eq.s32.totalorder %s21, 0
      %p80 = por %p78, %p79
      %p81 = scmp.ne.s32.totalorder %s67, %s68
      %p82 = scmp.eq.s32.totalorder %s22, 1
      %p83 = por %p81, %p82
      %p85 = scmp.ne.s32.totalorder %s68, %s84
      %p86 = scmp.eq.s32.totalorder %s22, 0
      %p87 = por %p85, %p86
      %s88 = ssub.s32 %s24, %s31
      %p89 = scmp.eq.s32.totalorder %s88, 0
      %s91 = sadd.s32 %s90, 1
      %s92 = scalar_select %p89, %s90, %s91
      %p95 = pneg %p89
      %p96 = scmp.eq.s32.totalorder %s16, 1
      %p97 = por %p95, %p96
      %p98 = scmp.ne.s32.totalorder %s90, %s93
      %p99 = scmp.eq.s32.totalorder %s16, 0
      %p100 = por %p98, %p99
      %p101 = scmp.ne.s32.totalorder %s90, %s93
      %p102 = scmp.eq.s32.totalorder %s21, 1
      %p103 = por %p101, %p102
      %p104 = scmp.ne.s32.totalorder %s93, %s94
      %p105 = scmp.eq.s32.totalorder %s21, 0
      %p106 = por %p104, %p105
      %p107 = scmp.ne.s32.totalorder %s93, %s94
      %p108 = scmp.eq.s32.totalorder %s22, 1
      %p109 = por %p107, %p108
      %p111 = scmp.ne.s32.totalorder %s94, %s110
      %p112 = scmp.eq.s32.totalorder %s22, 0
      %p113 = por %p111, %p112
      %s114 = ssub.s32 %s23, %s35
      %s115 = ssub.s32 %s24, %s31
      %s116 = sor.u32 %s114, %s115
      %p117 = scmp.eq.s32.totalorder %s116, 0
      %s119 = sadd.s32 %s118, 1
      %s120 = scalar_select %p117, %s118, %s119
      %p123 = pneg %p117
      %p124 = scmp.eq.s32.totalorder %s16, 1
      %p125 = por %p123, %p124
      %p126 = scmp.ne.s32.totalorder %s118, %s121
      %p127 = scmp.eq.s32.totalorder %s16, 0
      %p128 = por %p126, %p127
      %p129 = scmp.ne.s32.totalorder %s118, %s121
      %p130 = scmp.eq.s32.totalorder %s21, 1
      %p131 = por %p129, %p130
      %p132 = scmp.ne.s32.totalorder %s121, %s122
      %p133 = scmp.eq.s32.totalorder %s21, 0
      %p134 = por %p132, %p133
      %p135 = scmp.ne.s32.totalorder %s121, %s122
      %p136 = scmp.eq.s32.totalorder %s22, 1
      %p137 = por %p135, %p136
      %p139 = scmp.ne.s32.totalorder %s122, %s138
      %p140 = scmp.eq.s32.totalorder %s22, 0
      %p141 = por %p139, %p140
      %p142 = scmp.le.s32.totalorder 1, %s16
      %p143 = scmp.lt.s32.totalorder %s16, 3
      %p144 = pnand %p142, %p143
      %p145 = pneg %p144
      // Predicated region
      $region9: #{tpu_custom_call.1} parent=5 // pred_check
        _
      $region10: #{tpu_custom_call.1} parent=5 // pred_check_branch
        %147 = sbr.rel (%p144) target = $region12
      $region11: #{tpu_custom_call.1} parent=5 // pred_region
        %s148 = ssub.s32 %s16, 1
        // Predicated region
        $region13: #{tpu_custom_call.1} parent=11 // pred_check
          %p149 = pneg %p54
        $region14: #{tpu_custom_call.1} parent=11 // pred_check_branch
          %151 = sbr.rel (%p149) target = $region16
        $region15: #{tpu_custom_call.1} parent=11 // pred_region
          %s152 = smul.u32 4, %s25
          %s154 = ssub.s32 2048, 2048
          %155 = vsyncadd [#allocation3], %s154
          %s156 = smul.addr %s152, 8
          %s157 = smul.addr %s156, 64
          %s158 = scalar_lea.hbm %s0, %s157
          %s159 = sshll.u32 [#allocation2], 4
          %s160 = int_to_ptr.vmem [resolvable:$true] %s159
          %165 = dma.hbm_to_vmem [thread:$0]  %s158, 2048, %s160, [#allocation3], 512, 512, 32
        $region16: #{tpu_custom_call.1} parent=11 // pred_fallthru
          _
      $region12: #{tpu_custom_call.1} parent=5 // pred_fallthru
        _
      %p166 = scmp.lt.s32.totalorder %s16, 2
      // Predicated region
      $region17: #{tpu_custom_call.1} parent=5 // pred_check
        %p167 = pneg %p166
      $region18: #{tpu_custom_call.1} parent=5 // pred_check_branch
        %169 = sbr.rel (%p167) target = $region20
      $region19: #{tpu_custom_call.1} parent=5 // pred_region
        // Predicated region
        $region21: #{tpu_custom_call.1} parent=19 // pred_check
          %p170 = pneg %p74
        $region22: #{tpu_custom_call.1} parent=19 // pred_check_branch
          %172 = sbr.rel (%p170) target = $region24
        $region23: #{tpu_custom_call.1} parent=19 // pred_region
          %s173 = sand.u32 %s16, 1
          %s174 = scalar_lea.sflag [#allocation6], %s173
          %s175 = sand.u32 %s64, 1
          %s176 = smul.addr %s175, 1024
          %s177 = scalar_lea.vmem [#allocation5], %s176
          %s178 = smul.u32 2, %s24
          %s180 = ssub.s32 16384, 16384
          %181 = vsyncadd %s174, %s180
          %s182 = smul.addr %s178, 64
          %s183 = scalar_lea.hbm %s1, %s182
          %s184 = sshll.u32 %s177, 4
          %s185 = int_to_ptr.vmem [resolvable:$true] %s184
          %190 = dma.hbm_to_vmem [thread:$0]  %s183, 16384, %s185, %s174, 256, 128, 8
        $region24: #{tpu_custom_call.1} parent=19 // pred_fallthru
          _
        // Predicated region
        $region25: #{tpu_custom_call.1} parent=19 // pred_check
          %p191 = pneg %p100
        $region26: #{tpu_custom_call.1} parent=19 // pred_check_branch
          %193 = sbr.rel (%p191) target = $region28
        $region27: #{tpu_custom_call.1} parent=19 // pred_region
          %s194 = sand.u32 %s16, 1
          %s195 = scalar_lea.sflag [#allocation6], %s194
          %s196 = sand.u32 %s90, 1
          %s197 = smul.addr %s196, 2
          %s198 = scalar_lea.vmem [#allocation7], %s197
          %s199 = smul.u32 2, %s24
          %s201 = ssub.s32 32, 32
          %202 = vsyncadd %s195, %s201
          %s203 = smul.addr %s199, 16
          %s204 = scalar_lea.hbm %s2, %s203
          %s206 = sshll.u32 %s198, 4
          %s207 = int_to_ptr.vmem [resolvable:$true] %s206
          %209 = dma.hbm_to_vmem [thread:$0]  %s204, 32, %s207, %s195
        $region28: #{tpu_custom_call.1} parent=19 // pred_fallthru
          _
      $region20: #{tpu_custom_call.1} parent=5 // pred_fallthru
        _
      %p210 = scmp.le.s32.totalorder 1, %s16
      %p211 = scmp.lt.s32.totalorder %s16, 3
      %p212 = pnand %p210, %p211
      %p213 = pneg %p212
      // Predicated region
      $region29: #{tpu_custom_call.1} parent=5 // pred_check
        _
      $region30: #{tpu_custom_call.1} parent=5 // pred_check_branch
        %215 = sbr.rel (%p212) target = $region32
      $region31: #{tpu_custom_call.1} parent=5 // pred_region
        %s216 = ssub.s32 %s16, 1
        // Predicated region
        $region33: #{tpu_custom_call.1} parent=31 // pred_check
          %p217 = pneg %p54
        $region34: #{tpu_custom_call.1} parent=31 // pred_check_branch
          %219 = sbr.rel (%p217) target = $region36
        $region35: #{tpu_custom_call.1} parent=31 // pred_region
          %220 = dma.done [#allocation3], 2048
        $region36: #{tpu_custom_call.1} parent=31 // pred_fallthru
          _
        %s221 = sand.u32 %s21, 1
        %s222 = scalar_lea.sflag [#allocation6], %s221
        %s223 = sand.u32 %s67, 1
        %s224 = smul.addr %s223, 1024
        %s225 = scalar_lea.vmem [#allocation5], %s224
        // Predicated region
        $region37: #{tpu_custom_call.1} parent=31 // pred_check
          %p226 = pneg %p80
        $region38: #{tpu_custom_call.1} parent=31 // pred_check_branch
          %228 = sbr.rel (%p226) target = $region40
        $region39: #{tpu_custom_call.1} parent=31 // pred_region
          %229 = dma.done %s222, 16384
        $region40: #{tpu_custom_call.1} parent=31 // pred_fallthru
          _
        %s230 = sand.u32 %s21, 1
        %s231 = scalar_lea.sflag [#allocation6], %s230
        %s232 = sand.u32 %s93, 1
        %s233 = smul.addr %s232, 2
        %s234 = scalar_lea.vmem [#allocation7], %s233
        // Predicated region
        $region41: #{tpu_custom_call.1} parent=31 // pred_check
          %p235 = pneg %p106
        $region42: #{tpu_custom_call.1} parent=31 // pred_check_branch
          %237 = sbr.rel (%p235) target = $region44
        $region43: #{tpu_custom_call.1} parent=31 // pred_region
          %238 = dma.done %s231, 32
        $region44: #{tpu_custom_call.1} parent=31 // pred_fallthru
          _
        %p239 = pneg %p54
        %p240 = pneg %p51
        %s241 = sand.u32 %s21, 1
        %s242 = scalar_lea.sflag [#allocation6], %s241
        %s243 = sand.u32 %s67, 1
        %s244 = smul.addr %s243, 1024
        %s245 = scalar_lea.vmem [#allocation5], %s244
        %p246 = pneg %p80
        %p247 = pneg %p77
        %s248 = sand.u32 %s21, 1
        %s249 = scalar_lea.sflag [#allocation6], %s248
        %s250 = sand.u32 %s93, 1
        %s251 = smul.addr %s250, 2
        %s252 = scalar_lea.vmem [#allocation7], %s251
        %p253 = pneg %p106
        %p254 = pneg %p103
        %p255 = pneg %p134
        %p256 = pneg %p131
        %s257 = sand.u32 %s121, 1
        %s258 = scalar_lea.sflag [#allocation4], %s257
        %s259 = sand.u32 %s121, 1
        %s260 = smul.addr %s259, 32
        %s261 = scalar_lea.vmem [#allocation8], %s260
        %s262 = smul.u32 4, %s25
        %s263 = smul.u32 2, %s26
        %s264 = smul.u32 2, %s26
        %s265 = smul.u32 4, %s25
        %s266 = smul.u32 2, %s26
        %v267 = vld [vmem:[#allocation2] sm:$0xff]
        %v268 = vld [vmem:[#allocation2 + $0x8] sm:$0xff]
        %v269 = vld [vmem:[#allocation2 + $0x10] sm:$0xff]
        %v270 = vld [vmem:[#allocation2 + $0x18] sm:$0xff]
        %v271 = vld [vmem:[#allocation2 + $0x20] sm:$0xff]
        %v272 = vld [vmem:[#allocation2 + $0x28] sm:$0xff]
        %v273 = vld [vmem:[#allocation2 + $0x30] sm:$0xff]
        %v274 = vld [vmem:[#allocation2 + $0x38] sm:$0xff]
        %v275 = vld [vmem:[#allocation2 + $0x40] sm:$0xff]
        %v276 = vld [vmem:[#allocation2 + $0x48] sm:$0xff]
        %v277 = vld [vmem:[#allocation2 + $0x50] sm:$0xff]
        %v278 = vld [vmem:[#allocation2 + $0x58] sm:$0xff]
        %v279 = vld [vmem:[#allocation2 + $0x60] sm:$0xff]
        %v280 = vld [vmem:[#allocation2 + $0x68] sm:$0xff]
        %v281 = vld [vmem:[#allocation2 + $0x70] sm:$0xff]
        %v282 = vld [vmem:[#allocation2 + $0x78] sm:$0xff]
        %v283 = vld [vmem:[%s225] sm:$0xff]
        %v284 = vld [vmem:[%s225 + $0x8] sm:$0xff]
        %v285 = vld [vmem:[%s225 + $0x10] sm:$0xff]
        %v286 = vld [vmem:[%s225 + $0x18] sm:$0xff]
        %v287 = vld [vmem:[%s225 + $0x20] sm:$0xff]
        %v288 = vld [vmem:[%s225 + $0x28] sm:$0xff]
        %v289 = vld [vmem:[%s225 + $0x30] sm:$0xff]
        %v290 = vld [vmem:[%s225 + $0x38] sm:$0xff]
        %v291 = vld [vmem:[%s225 + $0x40] sm:$0xff]
        %v292 = vld [vmem:[%s225 + $0x48] sm:$0xff]
        %v293 = vld [vmem:[%s225 + $0x50] sm:$0xff]
        %v294 = vld [vmem:[%s225 + $0x58] sm:$0xff]
        %v295 = vld [vmem:[%s225 + $0x60] sm:$0xff]
        %v296 = vld [vmem:[%s225 + $0x68] sm:$0xff]
        %v297 = vld [vmem:[%s225 + $0x70] sm:$0xff]
        %v298 = vld [vmem:[%s225 + $0x78] sm:$0xff]
        %v299 = vld [vmem:[%s225 + $0x80] sm:$0xff]
        %v300 = vld [vmem:[%s225 + $0x88] sm:$0xff]
        %v301 = vld [vmem:[%s225 + $0x90] sm:$0xff]
        %v302 = vld [vmem:[%s225 + $0x98] sm:$0xff]
        %v303 = vld [vmem:[%s225 + $0xa0] sm:$0xff]
        %v304 = vld [vmem:[%s225 + $0xa8] sm:$0xff]
        %v305 = vld [vmem:[%s225 + $0xb0] sm:$0xff]
        %v306 = vld [vmem:[%s225 + $0xb8] sm:$0xff]
        %v307 = vld [vmem:[%s225 + $0xc0] sm:$0xff]
        %v308 = vld [vmem:[%s225 + $0xc8] sm:$0xff]
        %v309 = vld [vmem:[%s225 + $0xd0] sm:$0xff]
        %v310 = vld [vmem:[%s225 + $0xd8] sm:$0xff]
        %v311 = vld [vmem:[%s225 + $0xe0] sm:$0xff]
        %v312 = vld [vmem:[%s225 + $0xe8] sm:$0xff]
        %v313 = vld [vmem:[%s225 + $0xf0] sm:$0xff]
        %v314 = vld [vmem:[%s225 + $0xf8] sm:$0xff]
        %v315 = vld [vmem:[%s225 + $0x100] sm:$0xff]
        %v316 = vld [vmem:[%s225 + $0x108] sm:$0xff]
        %v317 = vld [vmem:[%s225 + $0x110] sm:$0xff]
        %v318 = vld [vmem:[%s225 + $0x118] sm:$0xff]
        %v319 = vld [vmem:[%s225 + $0x120] sm:$0xff]
        %v320 = vld [vmem:[%s225 + $0x128] sm:$0xff]
        %v321 = vld [vmem:[%s225 + $0x130] sm:$0xff]
        %v322 = vld [vmem:[%s225 + $0x138] sm:$0xff]
        %v323 = vld [vmem:[%s225 + $0x140] sm:$0xff]
        %v324 = vld [vmem:[%s225 + $0x148] sm:$0xff]
        %v325 = vld [vmem:[%s225 + $0x150] sm:$0xff]
        %v326 = vld [vmem:[%s225 + $0x158] sm:$0xff]
        %v327 = vld [vmem:[%s225 + $0x160] sm:$0xff]
        %v328 = vld [vmem:[%s225 + $0x168] sm:$0xff]
        %v329 = vld [vmem:[%s225 + $0x170] sm:$0xff]
        %v330 = vld [vmem:[%s225 + $0x178] sm:$0xff]
        %v331 = vld [vmem:[%s225 + $0x180] sm:$0xff]
        %v332 = vld [vmem:[%s225 + $0x188] sm:$0xff]
        %v333 = vld [vmem:[%s225 + $0x190] sm:$0xff]
        %v334 = vld [vmem:[%s225 + $0x198] sm:$0xff]
        %v335 = vld [vmem:[%s225 + $0x1a0] sm:$0xff]
        %v336 = vld [vmem:[%s225 + $0x1a8] sm:$0xff]
        %v337 = vld [vmem:[%s225 + $0x1b0] sm:$0xff]
        %v338 = vld [vmem:[%s225 + $0x1b8] sm:$0xff]
        %v339 = vld [vmem:[%s225 + $0x1c0] sm:$0xff]
        %v340 = vld [vmem:[%s225 + $0x1c8] sm:$0xff]
        %v341 = vld [vmem:[%s225 + $0x1d0] sm:$0xff]
        %v342 = vld [vmem:[%s225 + $0x1d8] sm:$0xff]
        %v343 = vld [vmem:[%s225 + $0x1e0] sm:$0xff]
        %v344 = vld [vmem:[%s225 + $0x1e8] sm:$0xff]
        %v345 = vld [vmem:[%s225 + $0x1f0] sm:$0xff]
        %v346 = vld [vmem:[%s225 + $0x1f8] sm:$0xff]
        %v347 = vld [vmem:[%s225 + $0x200] sm:$0xff]
        %v348 = vld [vmem:[%s225 + $0x208] sm:$0xff]
        %v349 = vld [vmem:[%s225 + $0x210] sm:$0xff]
        %v350 = vld [vmem:[%s225 + $0x218] sm:$0xff]
        %v351 = vld [vmem:[%s225 + $0x220] sm:$0xff]
        %v352 = vld [vmem:[%s225 + $0x228] sm:$0xff]
        %v353 = vld [vmem:[%s225 + $0x230] sm:$0xff]
        %v354 = vld [vmem:[%s225 + $0x238] sm:$0xff]
        %v355 = vld [vmem:[%s225 + $0x240] sm:$0xff]
        %v356 = vld [vmem:[%s225 + $0x248] sm:$0xff]
        %v357 = vld [vmem:[%s225 + $0x250] sm:$0xff]
        %v358 = vld [vmem:[%s225 + $0x258] sm:$0xff]
        %v359 = vld [vmem:[%s225 + $0x260] sm:$0xff]
        %v360 = vld [vmem:[%s225 + $0x268] sm:$0xff]
        %v361 = vld [vmem:[%s225 + $0x270] sm:$0xff]
        %v362 = vld [vmem:[%s225 + $0x278] sm:$0xff]
        %v363 = vld [vmem:[%s225 + $0x280] sm:$0xff]
        %v364 = vld [vmem:[%s225 + $0x288] sm:$0xff]
        %v365 = vld [vmem:[%s225 + $0x290] sm:$0xff]
        %v366 = vld [vmem:[%s225 + $0x298] sm:$0xff]
        %v367 = vld [vmem:[%s225 + $0x2a0] sm:$0xff]
        %v368 = vld [vmem:[%s225 + $0x2a8] sm:$0xff]
        %v369 = vld [vmem:[%s225 + $0x2b0] sm:$0xff]
        %v370 = vld [vmem:[%s225 + $0x2b8] sm:$0xff]
        %v371 = vld [vmem:[%s225 + $0x2c0] sm:$0xff]
        %v372 = vld [vmem:[%s225 + $0x2c8] sm:$0xff]
        %v373 = vld [vmem:[%s225 + $0x2d0] sm:$0xff]
        %v374 = vld [vmem:[%s225 + $0x2d8] sm:$0xff]
        %v375 = vld [vmem:[%s225 + $0x2e0] sm:$0xff]
        %v376 = vld [vmem:[%s225 + $0x2e8] sm:$0xff]
        %v377 = vld [vmem:[%s225 + $0x2f0] sm:$0xff]
        %v378 = vld [vmem:[%s225 + $0x2f8] sm:$0xff]
        %v379 = vld [vmem:[%s225 + $0x300] sm:$0xff]
        %v380 = vld [vmem:[%s225 + $0x308] sm:$0xff]
        %v381 = vld [vmem:[%s225 + $0x310] sm:$0xff]
        %v382 = vld [vmem:[%s225 + $0x318] sm:$0xff]
        %v383 = vld [vmem:[%s225 + $0x320] sm:$0xff]
        %v384 = vld [vmem:[%s225 + $0x328] sm:$0xff]
        %v385 = vld [vmem:[%s225 + $0x330] sm:$0xff]
        %v386 = vld [vmem:[%s225 + $0x338] sm:$0xff]
        %v387 = vld [vmem:[%s225 + $0x340] sm:$0xff]
        %v388 = vld [vmem:[%s225 + $0x348] sm:$0xff]
        %v389 = vld [vmem:[%s225 + $0x350] sm:$0xff]
        %v390 = vld [vmem:[%s225 + $0x358] sm:$0xff]
        %v391 = vld [vmem:[%s225 + $0x360] sm:$0xff]
        %v392 = vld [vmem:[%s225 + $0x368] sm:$0xff]
        %v393 = vld [vmem:[%s225 + $0x370] sm:$0xff]
        %v394 = vld [vmem:[%s225 + $0x378] sm:$0xff]
        %v395 = vld [vmem:[%s225 + $0x380] sm:$0xff]
        %v396 = vld [vmem:[%s225 + $0x388] sm:$0xff]
        %v397 = vld [vmem:[%s225 + $0x390] sm:$0xff]
        %v398 = vld [vmem:[%s225 + $0x398] sm:$0xff]
        %v399 = vld [vmem:[%s225 + $0x3a0] sm:$0xff]
        %v400 = vld [vmem:[%s225 + $0x3a8] sm:$0xff]
        %v401 = vld [vmem:[%s225 + $0x3b0] sm:$0xff]
        %v402 = vld [vmem:[%s225 + $0x3b8] sm:$0xff]
        %v403 = vld [vmem:[%s225 + $0x3c0] sm:$0xff]
        %v404 = vld [vmem:[%s225 + $0x3c8] sm:$0xff]
        %v405 = vld [vmem:[%s225 + $0x3d0] sm:$0xff]
        %v406 = vld [vmem:[%s225 + $0x3d8] sm:$0xff]
        %v407 = vld [vmem:[%s225 + $0x3e0] sm:$0xff]
        %v408 = vld [vmem:[%s225 + $0x3e8] sm:$0xff]
        %v409 = vld [vmem:[%s225 + $0x3f0] sm:$0xff]
        %v410 = vld [vmem:[%s225 + $0x3f8] sm:$0xff]
        %v411 = vld [vmem:[%s234] sm:$0x3]
        %v413 = vlaneseq
        %v414 = vshrl.u32 %v413, 7
        %v415 = vsub.s32 0, %v414
        %v416 = vrot.slane %v411, %v415
        %v417 = vlaneseq
        %v418 = vshrl.u32 %v417, 7
        %v419 = vsub.s32 1, %v418
        %v420 = vrot.slane %v411, %v419
        %v439 = vunpack.c.l.b16 %v267
        %v440 = vunpack.c.h.b16 %v267
        %v441 = vunpack.c.l.b16 %v268
        %v442 = vunpack.c.h.b16 %v268
        %v443 = vunpack.c.l.b16 %v269
        %v444 = vunpack.c.h.b16 %v269
        %v445 = vunpack.c.l.b16 %v270
        %v446 = vunpack.c.h.b16 %v270
        %v447 = vunpack.c.l.b16 %v271
        %v448 = vunpack.c.h.b16 %v271
        %v449 = vunpack.c.l.b16 %v272
        %v450 = vunpack.c.h.b16 %v272
        %v451 = vunpack.c.l.b16 %v273
        %v452 = vunpack.c.h.b16 %v273
        %v453 = vunpack.c.l.b16 %v274
        %v454 = vunpack.c.h.b16 %v274
        %v455 = vunpack.c.l.b16 %v275
        %v456 = vunpack.c.h.b16 %v275
        %v457 = vunpack.c.l.b16 %v276
        %v458 = vunpack.c.h.b16 %v276
        %v459 = vunpack.c.l.b16 %v277
        %v460 = vunpack.c.h.b16 %v277
        %v461 = vunpack.c.l.b16 %v278
        %v462 = vunpack.c.h.b16 %v278
        %v463 = vunpack.c.l.b16 %v279
        %v464 = vunpack.c.h.b16 %v279
        %v465 = vunpack.c.l.b16 %v280
        %v466 = vunpack.c.h.b16 %v280
        %v467 = vunpack.c.l.b16 %v281
        %v468 = vunpack.c.h.b16 %v281
        %v469 = vunpack.c.l.b16 %v282
        %v470 = vunpack.c.h.b16 %v282
        %v471 = vpack.c.b16 %v447, %v439
        %v472 = vpack.c.b16 %v448, %v440
        %v473 = vpack.c.b16 %v449, %v441
        %v474 = vpack.c.b16 %v450, %v442
        %v475 = vpack.c.b16 %v451, %v443
        %v476 = vpack.c.b16 %v452, %v444
        %v477 = vpack.c.b16 %v453, %v445
        %v478 = vpack.c.b16 %v454, %v446
        %v479 = vpack.c.b16 %v463, %v455
        %v480 = vpack.c.b16 %v464, %v456
        %v481 = vpack.c.b16 %v465, %v457
        %v482 = vpack.c.b16 %v466, %v458
        %v483 = vpack.c.b16 %v467, %v459
        %v484 = vpack.c.b16 %v468, %v460
        %v485 = vpack.c.b16 %v469, %v461
        %v486 = vpack.c.b16 %v470, %v462
        %v631 = vunpack.c.l.b16 %v283
        %v632 = vunpack.c.h.b16 %v283
        %v633 = vunpack.c.l.b16 %v284
        %v634 = vunpack.c.h.b16 %v284
        %v635 = vunpack.c.l.b16 %v285
        %v636 = vunpack.c.h.b16 %v285
        %v637 = vunpack.c.l.b16 %v286
        %v638 = vunpack.c.h.b16 %v286
        %v639 = vunpack.c.l.b16 %v287
        %v640 = vunpack.c.h.b16 %v287
        %v641 = vunpack.c.l.b16 %v288
        %v642 = vunpack.c.h.b16 %v288
        %v643 = vunpack.c.l.b16 %v289
        %v644 = vunpack.c.h.b16 %v289
        %v645 = vunpack.c.l.b16 %v290
        %v646 = vunpack.c.h.b16 %v290
        %v647 = vunpack.c.l.b16 %v291
        %v648 = vunpack.c.h.b16 %v291
        %v649 = vunpack.c.l.b16 %v292
        %v650 = vunpack.c.h.b16 %v292
        %v651 = vunpack.c.l.b16 %v293
        %v652 = vunpack.c.h.b16 %v293
        %v653 = vunpack.c.l.b16 %v294
        %v654 = vunpack.c.h.b16 %v294
        %v655 = vunpack.c.l.b16 %v295
        %v656 = vunpack.c.h.b16 %v295
        %v657 = vunpack.c.l.b16 %v296
        %v658 = vunpack.c.h.b16 %v296
        %v659 = vunpack.c.l.b16 %v297
        %v660 = vunpack.c.h.b16 %v297
        %v661 = vunpack.c.l.b16 %v298
        %v662 = vunpack.c.h.b16 %v298
        %v663 = vunpack.c.l.b16 %v299
        %v664 = vunpack.c.h.b16 %v299
        %v665 = vunpack.c.l.b16 %v300
        %v666 = vunpack.c.h.b16 %v300
        %v667 = vunpack.c.l.b16 %v301
        %v668 = vunpack.c.h.b16 %v301
        %v669 = vunpack.c.l.b16 %v302
        %v670 = vunpack.c.h.b16 %v302
        %v671 = vunpack.c.l.b16 %v303
        %v672 = vunpack.c.h.b16 %v303
        %v673 = vunpack.c.l.b16 %v304
        %v674 = vunpack.c.h.b16 %v304
        %v675 = vunpack.c.l.b16 %v305
        %v676 = vunpack.c.h.b16 %v305
        %v677 = vunpack.c.l.b16 %v306
        %v678 = vunpack.c.h.b16 %v306
        %v679 = vunpack.c.l.b16 %v307
        %v680 = vunpack.c.h.b16 %v307
        %v681 = vunpack.c.l.b16 %v308
        %v682 = vunpack.c.h.b16 %v308
        %v683 = vunpack.c.l.b16 %v309
        %v684 = vunpack.c.h.b16 %v309
        %v685 = vunpack.c.l.b16 %v310
        %v686 = vunpack.c.h.b16 %v310
        %v687 = vunpack.c.l.b16 %v311
        %v688 = vunpack.c.h.b16 %v311
        %v689 = vunpack.c.l.b16 %v312
        %v690 = vunpack.c.h.b16 %v312
        %v691 = vunpack.c.l.b16 %v313
        %v692 = vunpack.c.h.b16 %v313
        %v693 = vunpack.c.l.b16 %v314
        %v694 = vunpack.c.h.b16 %v314
        %v695 = vunpack.c.l.b16 %v315
        %v696 = vunpack.c.h.b16 %v315
        %v697 = vunpack.c.l.b16 %v316
        %v698 = vunpack.c.h.b16 %v316
        %v699 = vunpack.c.l.b16 %v317
        %v700 = vunpack.c.h.b16 %v317
        %v701 = vunpack.c.l.b16 %v318
        %v702 = vunpack.c.h.b16 %v318
        %v703 = vunpack.c.l.b16 %v319
        %v704 = vunpack.c.h.b16 %v319
        %v705 = vunpack.c.l.b16 %v320
        %v706 = vunpack.c.h.b16 %v320
        %v707 = vunpack.c.l.b16 %v321
        %v708 = vunpack.c.h.b16 %v321
        %v709 = vunpack.c.l.b16 %v322
        %v710 = vunpack.c.h.b16 %v322
        %v711 = vunpack.c.l.b16 %v323
        %v712 = vunpack.c.h.b16 %v323
        %v713 = vunpack.c.l.b16 %v324
        %v714 = vunpack.c.h.b16 %v324
        %v715 = vunpack.c.l.b16 %v325
        %v716 = vunpack.c.h.b16 %v325
        %v717 = vunpack.c.l.b16 %v326
        %v718 = vunpack.c.h.b16 %v326
        %v719 = vunpack.c.l.b16 %v327
        %v720 = vunpack.c.h.b16 %v327
        %v721 = vunpack.c.l.b16 %v328
        %v722 = vunpack.c.h.b16 %v328
        %v723 = vunpack.c.l.b16 %v329
        %v724 = vunpack.c.h.b16 %v329
        %v725 = vunpack.c.l.b16 %v330
        %v726 = vunpack.c.h.b16 %v330
        %v727 = vunpack.c.l.b16 %v331
        %v728 = vunpack.c.h.b16 %v331
        %v729 = vunpack.c.l.b16 %v332
        %v730 = vunpack.c.h.b16 %v332
        %v731 = vunpack.c.l.b16 %v333
        %v732 = vunpack.c.h.b16 %v333
        %v733 = vunpack.c.l.b16 %v334
        %v734 = vunpack.c.h.b16 %v334
        %v735 = vunpack.c.l.b16 %v335
        %v736 = vunpack.c.h.b16 %v335
        %v737 = vunpack.c.l.b16 %v336
        %v738 = vunpack.c.h.b16 %v336
        %v739 = vunpack.c.l.b16 %v337
        %v740 = vunpack.c.h.b16 %v337
        %v741 = vunpack.c.l.b16 %v338
        %v742 = vunpack.c.h.b16 %v338
        %v743 = vunpack.c.l.b16 %v339
        %v744 = vunpack.c.h.b16 %v339
        %v745 = vunpack.c.l.b16 %v340
        %v746 = vunpack.c.h.b16 %v340
        %v747 = vunpack.c.l.b16 %v341
        %v748 = vunpack.c.h.b16 %v341
        %v749 = vunpack.c.l.b16 %v342
        %v750 = vunpack.c.h.b16 %v342
        %v751 = vunpack.c.l.b16 %v343
        %v752 = vunpack.c.h.b16 %v343
        %v753 = vunpack.c.l.b16 %v344
        %v754 = vunpack.c.h.b16 %v344
        %v755 = vunpack.c.l.b16 %v345
        %v756 = vunpack.c.h.b16 %v345
        %v757 = vunpack.c.l.b16 %v346
        %v758 = vunpack.c.h.b16 %v346
        %v759 = vunpack.c.l.b16 %v347
        %v760 = vunpack.c.h.b16 %v347
        %v761 = vunpack.c.l.b16 %v348
        %v762 = vunpack.c.h.b16 %v348
        %v763 = vunpack.c.l.b16 %v349
        %v764 = vunpack.c.h.b16 %v349
        %v765 = vunpack.c.l.b16 %v350
        %v766 = vunpack.c.h.b16 %v350
        %v767 = vunpack.c.l.b16 %v351
        %v768 = vunpack.c.h.b16 %v351
        %v769 = vunpack.c.l.b16 %v352
        %v770 = vunpack.c.h.b16 %v352
        %v771 = vunpack.c.l.b16 %v353
        %v772 = vunpack.c.h.b16 %v353
        %v773 = vunpack.c.l.b16 %v354
        %v774 = vunpack.c.h.b16 %v354
        %v775 = vunpack.c.l.b16 %v355
        %v776 = vunpack.c.h.b16 %v355
        %v777 = vunpack.c.l.b16 %v356
        %v778 = vunpack.c.h.b16 %v356
        %v779 = vunpack.c.l.b16 %v357
        %v780 = vunpack.c.h.b16 %v357
        %v781 = vunpack.c.l.b16 %v358
        %v782 = vunpack.c.h.b16 %v358
        %v783 = vunpack.c.l.b16 %v359
        %v784 = vunpack.c.h.b16 %v359
        %v785 = vunpack.c.l.b16 %v360
        %v786 = vunpack.c.h.b16 %v360
        %v787 = vunpack.c.l.b16 %v361
        %v788 = vunpack.c.h.b16 %v361
        %v789 = vunpack.c.l.b16 %v362
        %v790 = vunpack.c.h.b16 %v362
        %v791 = vunpack.c.l.b16 %v363
        %v792 = vunpack.c.h.b16 %v363
        %v793 = vunpack.c.l.b16 %v364
        %v794 = vunpack.c.h.b16 %v364
        %v795 = vunpack.c.l.b16 %v365
        %v796 = vunpack.c.h.b16 %v365
        %v797 = vunpack.c.l.b16 %v366
        %v798 = vunpack.c.h.b16 %v366
        %v799 = vunpack.c.l.b16 %v367
        %v800 = vunpack.c.h.b16 %v367
        %v801 = vunpack.c.l.b16 %v368
        %v802 = vunpack.c.h.b16 %v368
        %v803 = vunpack.c.l.b16 %v369
        %v804 = vunpack.c.h.b16 %v369
        %v805 = vunpack.c.l.b16 %v370
        %v806 = vunpack.c.h.b16 %v370
        %v807 = vunpack.c.l.b16 %v371
        %v808 = vunpack.c.h.b16 %v371
        %v809 = vunpack.c.l.b16 %v372
        %v810 = vunpack.c.h.b16 %v372
        %v811 = vunpack.c.l.b16 %v373
        %v812 = vunpack.c.h.b16 %v373
        %v813 = vunpack.c.l.b16 %v374
        %v814 = vunpack.c.h.b16 %v374
        %v815 = vunpack.c.l.b16 %v375
        %v816 = vunpack.c.h.b16 %v375
        %v817 = vunpack.c.l.b16 %v376
        %v818 = vunpack.c.h.b16 %v376
        %v819 = vunpack.c.l.b16 %v377
        %v820 = vunpack.c.h.b16 %v377
        %v821 = vunpack.c.l.b16 %v378
        %v822 = vunpack.c.h.b16 %v378
        %v823 = vunpack.c.l.b16 %v379
        %v824 = vunpack.c.h.b16 %v379
        %v825 = vunpack.c.l.b16 %v380
        %v826 = vunpack.c.h.b16 %v380
        %v827 = vunpack.c.l.b16 %v381
        %v828 = vunpack.c.h.b16 %v381
        %v829 = vunpack.c.l.b16 %v382
        %v830 = vunpack.c.h.b16 %v382
        %v831 = vunpack.c.l.b16 %v383
        %v832 = vunpack.c.h.b16 %v383
        %v833 = vunpack.c.l.b16 %v384
        %v834 = vunpack.c.h.b16 %v384
        %v835 = vunpack.c.l.b16 %v385
        %v836 = vunpack.c.h.b16 %v385
        %v837 = vunpack.c.l.b16 %v386
        %v838 = vunpack.c.h.b16 %v386
        %v839 = vunpack.c.l.b16 %v387
        %v840 = vunpack.c.h.b16 %v387
        %v841 = vunpack.c.l.b16 %v388
        %v842 = vunpack.c.h.b16 %v388
        %v843 = vunpack.c.l.b16 %v389
        %v844 = vunpack.c.h.b16 %v389
        %v845 = vunpack.c.l.b16 %v390
        %v846 = vunpack.c.h.b16 %v390
        %v847 = vunpack.c.l.b16 %v391
        %v848 = vunpack.c.h.b16 %v391
        %v849 = vunpack.c.l.b16 %v392
        %v850 = vunpack.c.h.b16 %v392
        %v851 = vunpack.c.l.b16 %v393
        %v852 = vunpack.c.h.b16 %v393
        %v853 = vunpack.c.l.b16 %v394
        %v854 = vunpack.c.h.b16 %v394
        %v855 = vunpack.c.l.b16 %v395
        %v856 = vunpack.c.h.b16 %v395
        %v857 = vunpack.c.l.b16 %v396
        %v858 = vunpack.c.h.b16 %v396
        %v859 = vunpack.c.l.b16 %v397
        %v860 = vunpack.c.h.b16 %v397
        %v861 = vunpack.c.l.b16 %v398
        %v862 = vunpack.c.h.b16 %v398
        %v863 = vunpack.c.l.b16 %v399
        %v864 = vunpack.c.h.b16 %v399
        %v865 = vunpack.c.l.b16 %v400
        %v866 = vunpack.c.h.b16 %v400
        %v867 = vunpack.c.l.b16 %v401
        %v868 = vunpack.c.h.b16 %v401
        %v869 = vunpack.c.l.b16 %v402
        %v870 = vunpack.c.h.b16 %v402
        %v871 = vunpack.c.l.b16 %v403
        %v872 = vunpack.c.h.b16 %v403
        %v873 = vunpack.c.l.b16 %v404
        %v874 = vunpack.c.h.b16 %v404
        %v875 = vunpack.c.l.b16 %v405
        %v876 = vunpack.c.h.b16 %v405
        %v877 = vunpack.c.l.b16 %v406
        %v878 = vunpack.c.h.b16 %v406
        %v879 = vunpack.c.l.b16 %v407
        %v880 = vunpack.c.h.b16 %v407
        %v881 = vunpack.c.l.b16 %v408
        %v882 = vunpack.c.h.b16 %v408
        %v883 = vunpack.c.l.b16 %v409
        %v884 = vunpack.c.h.b16 %v409
        %v885 = vunpack.c.l.b16 %v410
        %v886 = vunpack.c.h.b16 %v410
        %v887 = vpack.c.b16 %v633, %v631
        %v888 = vpack.c.b16 %v634, %v632
        %v889 = vpack.c.b16 %v637, %v635
        %v890 = vpack.c.b16 %v638, %v636
        %v891 = vpack.c.b16 %v641, %v639
        %v892 = vpack.c.b16 %v642, %v640
        %v893 = vpack.c.b16 %v645, %v643
        %v894 = vpack.c.b16 %v646, %v644
        %v895 = vpack.c.b16 %v649, %v647
        %v896 = vpack.c.b16 %v650, %v648
        %v897 = vpack.c.b16 %v653, %v651
        %v898 = vpack.c.b16 %v654, %v652
        %v899 = vpack.c.b16 %v657, %v655
        %v900 = vpack.c.b16 %v658, %v656
        %v901 = vpack.c.b16 %v661, %v659
        %v902 = vpack.c.b16 %v662, %v660
        %v903 = vpack.c.b16 %v665, %v663
        %v904 = vpack.c.b16 %v666, %v664
        %v905 = vpack.c.b16 %v669, %v667
        %v906 = vpack.c.b16 %v670, %v668
        %v907 = vpack.c.b16 %v673, %v671
        %v908 = vpack.c.b16 %v674, %v672
        %v909 = vpack.c.b16 %v677, %v675
        %v910 = vpack.c.b16 %v678, %v676
        %v911 = vpack.c.b16 %v681, %v679
        %v912 = vpack.c.b16 %v682, %v680
        %v913 = vpack.c.b16 %v685, %v683
        %v914 = vpack.c.b16 %v686, %v684
        %v915 = vpack.c.b16 %v689, %v687
        %v916 = vpack.c.b16 %v690, %v688
        %v917 = vpack.c.b16 %v693, %v691
        %v918 = vpack.c.b16 %v694, %v692
        %v919 = vpack.c.b16 %v697, %v695
        %v920 = vpack.c.b16 %v698, %v696
        %v921 = vpack.c.b16 %v701, %v699
        %v922 = vpack.c.b16 %v702, %v700
        %v923 = vpack.c.b16 %v705, %v703
        %v924 = vpack.c.b16 %v706, %v704
        %v925 = vpack.c.b16 %v709, %v707
        %v926 = vpack.c.b16 %v710, %v708
        %v927 = vpack.c.b16 %v713, %v711
        %v928 = vpack.c.b16 %v714, %v712
        %v929 = vpack.c.b16 %v717, %v715
        %v930 = vpack.c.b16 %v718, %v716
        %v931 = vpack.c.b16 %v721, %v719
        %v932 = vpack.c.b16 %v722, %v720
        %v933 = vpack.c.b16 %v725, %v723
        %v934 = vpack.c.b16 %v726, %v724
        %v935 = vpack.c.b16 %v729, %v727
        %v936 = vpack.c.b16 %v730, %v728
        %v937 = vpack.c.b16 %v733, %v731
        %v938 = vpack.c.b16 %v734, %v732
        %v939 = vpack.c.b16 %v737, %v735
        %v940 = vpack.c.b16 %v738, %v736
        %v941 = vpack.c.b16 %v741, %v739
        %v942 = vpack.c.b16 %v742, %v740
        %v943 = vpack.c.b16 %v745, %v743
        %v944 = vpack.c.b16 %v746, %v744
        %v945 = vpack.c.b16 %v749, %v747
        %v946 = vpack.c.b16 %v750, %v748
        %v947 = vpack.c.b16 %v753, %v751
        %v948 = vpack.c.b16 %v754, %v752
        %v949 = vpack.c.b16 %v757, %v755
        %v950 = vpack.c.b16 %v758, %v756
        %v951 = vpack.c.b16 %v761, %v759
        %v952 = vpack.c.b16 %v762, %v760
        %v953 = vpack.c.b16 %v765, %v763
        %v954 = vpack.c.b16 %v766, %v764
        %v955 = vpack.c.b16 %v769, %v767
        %v956 = vpack.c.b16 %v770, %v768
        %v957 = vpack.c.b16 %v773, %v771
        %v958 = vpack.c.b16 %v774, %v772
        %v959 = vpack.c.b16 %v777, %v775
        %v960 = vpack.c.b16 %v778, %v776
        %v961 = vpack.c.b16 %v781, %v779
        %v962 = vpack.c.b16 %v782, %v780
        %v963 = vpack.c.b16 %v785, %v783
        %v964 = vpack.c.b16 %v786, %v784
        %v965 = vpack.c.b16 %v789, %v787
        %v966 = vpack.c.b16 %v790, %v788
        %v967 = vpack.c.b16 %v793, %v791
        %v968 = vpack.c.b16 %v794, %v792
        %v969 = vpack.c.b16 %v797, %v795
        %v970 = vpack.c.b16 %v798, %v796
        %v971 = vpack.c.b16 %v801, %v799
        %v972 = vpack.c.b16 %v802, %v800
        %v973 = vpack.c.b16 %v805, %v803
        %v974 = vpack.c.b16 %v806, %v804
        %v975 = vpack.c.b16 %v809, %v807
        %v976 = vpack.c.b16 %v810, %v808
        %v977 = vpack.c.b16 %v813, %v811
        %v978 = vpack.c.b16 %v814, %v812
        %v979 = vpack.c.b16 %v817, %v815
        %v980 = vpack.c.b16 %v818, %v816
        %v981 = vpack.c.b16 %v821, %v819
        %v982 = vpack.c.b16 %v822, %v820
        %v983 = vpack.c.b16 %v825, %v823
        %v984 = vpack.c.b16 %v826, %v824
        %v985 = vpack.c.b16 %v829, %v827
        %v986 = vpack.c.b16 %v830, %v828
        %v987 = vpack.c.b16 %v833, %v831
        %v988 = vpack.c.b16 %v834, %v832
        %v989 = vpack.c.b16 %v837, %v835
        %v990 = vpack.c.b16 %v838, %v836
        %v991 = vpack.c.b16 %v841, %v839
        %v992 = vpack.c.b16 %v842, %v840
        %v993 = vpack.c.b16 %v845, %v843
        %v994 = vpack.c.b16 %v846, %v844
        %v995 = vpack.c.b16 %v849, %v847
        %v996 = vpack.c.b16 %v850, %v848
        %v997 = vpack.c.b16 %v853, %v851
        %v998 = vpack.c.b16 %v854, %v852
        %v999 = vpack.c.b16 %v857, %v855
        %v1000 = vpack.c.b16 %v858, %v856
        %v1001 = vpack.c.b16 %v861, %v859
        %v1002 = vpack.c.b16 %v862, %v860
        %v1003 = vpack.c.b16 %v865, %v863
        %v1004 = vpack.c.b16 %v866, %v864
        %v1005 = vpack.c.b16 %v869, %v867
        %v1006 = vpack.c.b16 %v870, %v868
        %v1007 = vpack.c.b16 %v873, %v871
        %v1008 = vpack.c.b16 %v874, %v872
        %v1009 = vpack.c.b16 %v877, %v875
        %v1010 = vpack.c.b16 %v878, %v876
        %v1011 = vpack.c.b16 %v881, %v879
        %v1012 = vpack.c.b16 %v882, %v880
        %v1013 = vpack.c.b16 %v885, %v883
        %v1014 = vpack.c.b16 %v886, %v884
        %1143 = vmatprep.subr.bf16.mxu0 %v902
        %1144 = vmatpush1.bf16.msra.mxu0 %v901
        %1145 = vmatprep.subr.bf16.mxu0 %v900
        %1146 = vmatpush1.bf16.msra.mxu0 %v899
        %1147 = vmatprep.subr.bf16.mxu0 %v898
        %1148 = vmatpush1.bf16.msra.mxu0 %v897
        %1149 = vmatprep.subr.bf16.mxu0 %v896
        %1150 = vmatpush1.bf16.msra.mxu0 %v895
        %1151 = vmatprep.subr.bf16.mxu0 %v894
        %1152 = vmatpush1.bf16.msra.mxu0 %v893
        %1153 = vmatprep.subr.bf16.mxu0 %v892
        %1154 = vmatpush1.bf16.msra.mxu0 %v891
        %1155 = vmatprep.subr.bf16.mxu0 %v890
        %1156 = vmatpush1.bf16.msra.mxu0 %v889
        %1157 = vmatprep.subr.bf16.mxu0 %v888
        %1158 = vmatpush1.bf16.msra.mxu0 %v887
        %1159 = vmatprep.subr.bf16.mxu0 %v918
        %1160 = vmatpush2.bf16.msra.mxu0 %v917
        %1161 = vmatprep.subr.bf16.mxu0 %v916
        %1162 = vmatpush2.bf16.msra.mxu0 %v915
        %1163 = vmatprep.subr.bf16.mxu0 %v914
        %1164 = vmatpush2.bf16.msra.mxu0 %v913
        %1165 = vmatprep.subr.bf16.mxu0 %v912
        %1166 = vmatpush2.bf16.msra.mxu0 %v911
        %1167 = vmatprep.subr.bf16.mxu0 %v910
        %1168 = vmatpush2.bf16.msra.mxu0 %v909
        %1169 = vmatprep.subr.bf16.mxu0 %v908
        %1170 = vmatpush2.bf16.msra.mxu0 %v907
        %1171 = vmatprep.subr.bf16.mxu0 %v906
        %1172 = vmatpush2.bf16.msra.mxu0 %v905
        %1173 = vmatprep.subr.bf16.mxu0 %v904
        %1174 = vmatpush2.bf16.msra.mxu0 %v903
        %1175 = vmatprep.mubr.bf16.mxu0 %v472
        %1176 = vmatmul.mubr.bf16.gmra.mxu0 %v471
        %v1177 = vpop.f32.mrf.mxu0
        %v1178 = vadd.f32 %v416, %v1177
        %v1179 = vpop.f32.mrf.mxu0
        %v1180 = vadd.f32 %v420, %v1179
        %v1181 = vpop.f32.mrf.mxu0
        %v1182 = vadd.f32 %v416, %v1181
        %v1183 = vpop.f32.mrf.mxu0
        %v1184 = vadd.f32 %v420, %v1183
        %1185 = vmatprep.mubr.bf16.mxu0 %v480
        %1186 = vmatmul.mubr.bf16.gmra.mxu0 %v479
        %v1187 = vpop.f32.mrf.mxu0
        %v1188 = vadd.f32 %v416, %v1187
        %v1189 = vpop.f32.mrf.mxu0
        %v1190 = vadd.f32 %v420, %v1189
        %v1191 = vpop.f32.mrf.mxu0
        %v1192 = vadd.f32 %v416, %v1191
        %v1193 = vpop.f32.mrf.mxu0
        %v1194 = vadd.f32 %v420, %v1193
        %1195 = vdwg.mxu0
        %1196 = vmatprep.subr.bf16.mxu0 %v934
        %1197 = vmatpush1.bf16.msra.mxu0 %v933
        %1198 = vmatprep.subr.bf16.mxu0 %v932
        %1199 = vmatpush1.bf16.msra.mxu0 %v931
        %1200 = vmatprep.subr.bf16.mxu0 %v930
        %1201 = vmatpush1.bf16.msra.mxu0 %v929
        %1202 = vmatprep.subr.bf16.mxu0 %v928
        %1203 = vmatpush1.bf16.msra.mxu0 %v927
        %1204 = vmatprep.subr.bf16.mxu0 %v926
        %1205 = vmatpush1.bf16.msra.mxu0 %v925
        %1206 = vmatprep.subr.bf16.mxu0 %v924
        %1207 = vmatpush1.bf16.msra.mxu0 %v923
        %1208 = vmatprep.subr.bf16.mxu0 %v922
        %1209 = vmatpush1.bf16.msra.mxu0 %v921
        %1210 = vmatprep.subr.bf16.mxu0 %v920
        %1211 = vmatpush1.bf16.msra.mxu0 %v919
        %1212 = vmatprep.subr.bf16.mxu0 %v950
        %1213 = vmatpush2.bf16.msra.mxu0 %v949
        %1214 = vmatprep.subr.bf16.mxu0 %v948
        %1215 = vmatpush2.bf16.msra.mxu0 %v947
        %1216 = vmatprep.subr.bf16.mxu0 %v946
        %1217 = vmatpush2.bf16.msra.mxu0 %v945
        %1218 = vmatprep.subr.bf16.mxu0 %v944
        %1219 = vmatpush2.bf16.msra.mxu0 %v943
        %1220 = vmatprep.subr.bf16.mxu0 %v942
        %1221 = vmatpush2.bf16.msra.mxu0 %v941
        %1222 = vmatprep.subr.bf16.mxu0 %v940
        %1223 = vmatpush2.bf16.msra.mxu0 %v939
        %1224 = vmatprep.subr.bf16.mxu0 %v938
        %1225 = vmatpush2.bf16.msra.mxu0 %v937
        %1226 = vmatprep.subr.bf16.mxu0 %v936
        %1227 = vmatpush2.bf16.msra.mxu0 %v935
        %1228 = vmatprep.mubr.bf16.mxu0 %v474
        %1229 = vmatmul.mubr.bf16.gmra.mxu0 %v473
        %v1230 = vpop.f32.mrf.mxu0
        %v1231 = vadd.f32 %v1178, %v1230
        %v1232 = vpop.f32.mrf.mxu0
        %v1233 = vadd.f32 %v1180, %v1232
        %v1234 = vpop.f32.mrf.mxu0
        %v1235 = vadd.f32 %v1182, %v1234
        %v1236 = vpop.f32.mrf.mxu0
        %v1237 = vadd.f32 %v1184, %v1236
        %1238 = vmatprep.mubr.bf16.mxu0 %v482
        %1239 = vmatmul.mubr.bf16.gmra.mxu0 %v481
        %v1240 = vpop.f32.mrf.mxu0
        %v1241 = vadd.f32 %v1188, %v1240
        %v1242 = vpop.f32.mrf.mxu0
        %v1243 = vadd.f32 %v1190, %v1242
        %v1244 = vpop.f32.mrf.mxu0
        %v1245 = vadd.f32 %v1192, %v1244
        %v1246 = vpop.f32.mrf.mxu0
        %v1247 = vadd.f32 %v1194, %v1246
        %1248 = vdwg.mxu0
        %1249 = vmatprep.subr.bf16.mxu0 %v966
        %1250 = vmatpush1.bf16.msra.mxu0 %v965
        %1251 = vmatprep.subr.bf16.mxu0 %v964
        %1252 = vmatpush1.bf16.msra.mxu0 %v963
        %1253 = vmatprep.subr.bf16.mxu0 %v962
        %1254 = vmatpush1.bf16.msra.mxu0 %v961
        %1255 = vmatprep.subr.bf16.mxu0 %v960
        %1256 = vmatpush1.bf16.msra.mxu0 %v959
        %1257 = vmatprep.subr.bf16.mxu0 %v958
        %1258 = vmatpush1.bf16.msra.mxu0 %v957
        %1259 = vmatprep.subr.bf16.mxu0 %v956
        %1260 = vmatpush1.bf16.msra.mxu0 %v955
        %1261 = vmatprep.subr.bf16.mxu0 %v954
        %1262 = vmatpush1.bf16.msra.mxu0 %v953
        %1263 = vmatprep.subr.bf16.mxu0 %v952
        %1264 = vmatpush1.bf16.msra.mxu0 %v951
        %1265 = vmatprep.subr.bf16.mxu0 %v982
        %1266 = vmatpush2.bf16.msra.mxu0 %v981
        %1267 = vmatprep.subr.bf16.mxu0 %v980
        %1268 = vmatpush2.bf16.msra.mxu0 %v979
        %1269 = vmatprep.subr.bf16.mxu0 %v978
        %1270 = vmatpush2.bf16.msra.mxu0 %v977
        %1271 = vmatprep.subr.bf16.mxu0 %v976
        %1272 = vmatpush2.bf16.msra.mxu0 %v975
        %1273 = vmatprep.subr.bf16.mxu0 %v974
        %1274 = vmatpush2.bf16.msra.mxu0 %v973
        %1275 = vmatprep.subr.bf16.mxu0 %v972
        %1276 = vmatpush2.bf16.msra.mxu0 %v971
        %1277 = vmatprep.subr.bf16.mxu0 %v970
        %1278 = vmatpush2.bf16.msra.mxu0 %v969
        %1279 = vmatprep.subr.bf16.mxu0 %v968
        %1280 = vmatpush2.bf16.msra.mxu0 %v967
        %1281 = vmatprep.mubr.bf16.mxu0 %v476
        %1282 = vmatmul.mubr.bf16.gmra.mxu0 %v475
        %v1283 = vpop.f32.mrf.mxu0
        %v1284 = vadd.f32 %v1231, %v1283
        %v1285 = vpop.f32.mrf.mxu0
        %v1286 = vadd.f32 %v1233, %v1285
        %v1287 = vpop.f32.mrf.mxu0
        %v1288 = vadd.f32 %v1235, %v1287
        %v1289 = vpop.f32.mrf.mxu0
        %v1290 = vadd.f32 %v1237, %v1289
        %1291 = vmatprep.mubr.bf16.mxu0 %v484
        %1292 = vmatmul.mubr.bf16.gmra.mxu0 %v483
        %v1293 = vpop.f32.mrf.mxu0
        %v1294 = vadd.f32 %v1241, %v1293
        %v1295 = vpop.f32.mrf.mxu0
        %v1296 = vadd.f32 %v1243, %v1295
        %v1297 = vpop.f32.mrf.mxu0
        %v1298 = vadd.f32 %v1245, %v1297
        %v1299 = vpop.f32.mrf.mxu0
        %v1300 = vadd.f32 %v1247, %v1299
        %1301 = vdwg.mxu0
        %1302 = vmatprep.subr.bf16.mxu0 %v998
        %1303 = vmatpush1.bf16.msra.mxu0 %v997
        %1304 = vmatprep.subr.bf16.mxu0 %v996
        %1305 = vmatpush1.bf16.msra.mxu0 %v995
        %1306 = vmatprep.subr.bf16.mxu0 %v994
        %1307 = vmatpush1.bf16.msra.mxu0 %v993
        %1308 = vmatprep.subr.bf16.mxu0 %v992
        %1309 = vmatpush1.bf16.msra.mxu0 %v991
        %1310 = vmatprep.subr.bf16.mxu0 %v990
        %1311 = vmatpush1.bf16.msra.mxu0 %v989
        %1312 = vmatprep.subr.bf16.mxu0 %v988
        %1313 = vmatpush1.bf16.msra.mxu0 %v987
        %1314 = vmatprep.subr.bf16.mxu0 %v986
        %1315 = vmatpush1.bf16.msra.mxu0 %v985
        %1316 = vmatprep.subr.bf16.mxu0 %v984
        %1317 = vmatpush1.bf16.msra.mxu0 %v983
        %1318 = vmatprep.subr.bf16.mxu0 %v1014
        %1319 = vmatpush2.bf16.msra.mxu0 %v1013
        %1320 = vmatprep.subr.bf16.mxu0 %v1012
        %1321 = vmatpush2.bf16.msra.mxu0 %v1011
        %1322 = vmatprep.subr.bf16.mxu0 %v1010
        %1323 = vmatpush2.bf16.msra.mxu0 %v1009
        %1324 = vmatprep.subr.bf16.mxu0 %v1008
        %1325 = vmatpush2.bf16.msra.mxu0 %v1007
        %1326 = vmatprep.subr.bf16.mxu0 %v1006
        %1327 = vmatpush2.bf16.msra.mxu0 %v1005
        %1328 = vmatprep.subr.bf16.mxu0 %v1004
        %1329 = vmatpush2.bf16.msra.mxu0 %v1003
        %1330 = vmatprep.subr.bf16.mxu0 %v1002
        %1331 = vmatpush2.bf16.msra.mxu0 %v1001
        %1332 = vmatprep.subr.bf16.mxu0 %v1000
        %1333 = vmatpush2.bf16.msra.mxu0 %v999
        %1334 = vmatprep.mubr.bf16.mxu0 %v478
        %1335 = vmatmul.mubr.bf16.gmra.mxu0 %v477
        %v1336 = vpop.f32.mrf.mxu0
        %v1337 = vadd.f32 %v1284, %v1336
        %v1338 = vpop.f32.mrf.mxu0
        %v1339 = vadd.f32 %v1286, %v1338
        %v1340 = vpop.f32.mrf.mxu0
        %v1341 = vadd.f32 %v1288, %v1340
        %v1342 = vpop.f32.mrf.mxu0
        %v1343 = vadd.f32 %v1290, %v1342
        %1344 = vmatprep.mubr.bf16.mxu0 %v486
        %1345 = vmatmul.mubr.bf16.gmra.mxu0 %v485
        %v1346 = vpop.f32.mrf.mxu0
        %v1347 = vadd.f32 %v1294, %v1346
        %v1348 = vpop.f32.mrf.mxu0
        %v1349 = vadd.f32 %v1296, %v1348
        %v1350 = vpop.f32.mrf.mxu0
        %v1351 = vadd.f32 %v1298, %v1350
        %v1352 = vpop.f32.mrf.mxu0
        %v1353 = vadd.f32 %v1300, %v1352
        %1354 = vdwg.mxu0
        %vm1355 = vcmp.ge.f32.partialorder %v1337, 0.0
        %vm1356 = vcmp.ge.f32.partialorder %v1339, 0.0
        %vm1357 = vcmp.ge.f32.partialorder %v1341, 0.0
        %vm1358 = vcmp.ge.f32.partialorder %v1343, 0.0
        %vm1359 = vcmp.ge.f32.partialorder %v1347, 0.0
        %vm1360 = vcmp.ge.f32.partialorder %v1349, 0.0
        %vm1361 = vcmp.ge.f32.partialorder %v1351, 0.0
        %vm1362 = vcmp.ge.f32.partialorder %v1353, 0.0
        %v1363 = vmul.f32 %v1337, 0.1
        %v1364 = vmul.f32 %v1339, 0.1
        %v1365 = vmul.f32 %v1341, 0.1
        %v1366 = vmul.f32 %v1343, 0.1
        %v1367 = vmul.f32 %v1347, 0.1
        %v1368 = vmul.f32 %v1349, 0.1
        %v1369 = vmul.f32 %v1351, 0.1
        %v1370 = vmul.f32 %v1353, 0.1
        %v1371 = vsel %vm1355, %v1337, %v1363
        %v1372 = vsel %vm1356, %v1339, %v1364
        %v1373 = vsel %vm1357, %v1341, %v1365
        %v1374 = vsel %vm1358, %v1343, %v1366
        %v1375 = vsel %vm1359, %v1347, %v1367
        %v1376 = vsel %vm1360, %v1349, %v1368
        %v1377 = vsel %vm1361, %v1351, %v1369
        %v1378 = vsel %vm1362, %v1353, %v1370
        %v1379 = vpack.c.bf16 %v1373, %v1371
        %v1380 = vpack.c.bf16 %v1374, %v1372
        %v1381 = vpack.c.bf16 %v1377, %v1375
        %v1382 = vpack.c.bf16 %v1378, %v1376
        %v1387 = vunpack.c.l.b16 %v1379
        %v1388 = vunpack.c.l.b16 %v1380
        %v1389 = vunpack.c.h.b16 %v1379
        %v1390 = vunpack.c.h.b16 %v1380
        %v1391 = vunpack.c.l.b16 %v1381
        %v1392 = vunpack.c.l.b16 %v1382
        %v1393 = vunpack.c.h.b16 %v1381
        %v1394 = vunpack.c.h.b16 %v1382
        %v1395 = vpack.c.b16 %v1388, %v1387
        %v1396 = vpack.c.b16 %v1390, %v1389
        %v1397 = vpack.c.b16 %v1392, %v1391
        %v1398 = vpack.c.b16 %v1394, %v1393
        %1403 = vst [vmem:[%s261] sm:$0xff] %v1395
        %1404 = vst [vmem:[%s261 + $0x8] sm:$0xff] %v1396
        %1405 = vst [vmem:[%s261 + $0x10] sm:$0xff] %v1397
        %1406 = vst [vmem:[%s261 + $0x18] sm:$0xff] %v1398
        %s1407 = sand.u32 %s121, 1
        %s1408 = scalar_lea.sflag [#allocation4], %s1407
        %s1409 = sand.u32 %s121, 1
        %s1410 = smul.addr %s1409, 32
        %s1411 = scalar_lea.vmem [#allocation8], %s1410
        // Predicated region
        $region45: #{tpu_custom_call.1} parent=31 // pred_check
          %p1412 = pneg %p131
        $region46: #{tpu_custom_call.1} parent=31 // pred_check_branch
          %1414 = sbr.rel (%p1412) target = $region48
        $region47: #{tpu_custom_call.1} parent=31 // pred_region
          %s1415 = smul.u32 4, %s25
          %s1416 = smul.u32 2, %s26
          %s1418 = ssub.s32 512, 512
          %1419 = vsyncadd %s1408, %s1418
          %s1420 = smul.addr %s1415, 4
          %s1421 = sadd.s32 %s1416, %s1420
          %s1422 = smul.addr %s1421, 64
          %s1423 = scalar_lea.hbm %s3, %s1422
          %s1424 = sshll.u32 %s1411, 4
          %s1425 = int_to_ptr.vmem [resolvable:$true] %s1424
          %1430 = dma.vmem_to_hbm [thread:$0]  %s1425, 512, %s1423, %s1408, 128, 256, 8
        $region48: #{tpu_custom_call.1} parent=31 // pred_fallthru
          _
      $region32: #{tpu_custom_call.1} parent=5 // pred_fallthru
        _
      %p1431 = scmp.le.s32.totalorder 2, %s16
      // Predicated region
      $region49: #{tpu_custom_call.1} parent=5 // pred_check
        %p1432 = pneg %p1431
      $region50: #{tpu_custom_call.1} parent=5 // pred_check_branch
        %1434 = sbr.rel (%p1432) target = $region52
      $region51: #{tpu_custom_call.1} parent=5 // pred_region
        %s1435 = ssub.s32 %s16, 2
        // Predicated region
        $region53: #{tpu_custom_call.1} parent=51 // pred_check
          %p1436 = pneg %p137
        $region54: #{tpu_custom_call.1} parent=51 // pred_check_branch
          %1438 = sbr.rel (%p1436) target = $region56
        $region55: #{tpu_custom_call.1} parent=51 // pred_region
          %s1439 = sand.u32 %s122, 1
          %s1440 = scalar_lea.sflag [#allocation4], %s1439
          %s1441 = sand.u32 %s122, 1
          %s1442 = smul.addr %s1441, 32
          %s1443 = scalar_lea.vmem [#allocation8], %s1442
          %1444 = dma.done %s1440, 512
        $region56: #{tpu_custom_call.1} parent=51 // pred_fallthru
          _
      $region52: #{tpu_custom_call.1} parent=5 // pred_fallthru
        _
    $region6: #{tpu_custom_call.1} parent=1 // loop_footer
      %s20 = sadd.s32 1, %s16
    $region7: #{tpu_custom_call.1} parent=1 // loop_footer_branch
      %15 = sbr.rel target = $region3
    $region8: #{tpu_custom_call.1} parent=1 // loop_exit
      _
    %1445 = vsyncpa [#allocation3], 1
    %s1446 = scalar_lea.sflag [#allocation3], 1
    %1447 = vsyncpa %s1446, 1
    %1448 = vsyncpa [#allocation6], 1
    %s1449 = scalar_lea.sflag [#allocation6], 1
    %1450 = vsyncpa %s1449, 1
    %1451 = vsyncpa [#allocation4], 1
    %s1452 = scalar_lea.sflag [#allocation4], 1
    %1453 = vsyncpa %s1452, 1

</llo_original>
